<compile_context>
chip_gen: v7x
topology: tpu7x:2x2x1
jax: 0.10.0
libtpu: 0.0.40
codegen_flags: <defaults>
</compile_context>

<pallas_src>
import jax
import jax.numpy as jnp
from jax.experimental import pallas as pl
from jax.experimental.pallas import tpu as pltpu

_LANES = 128


def _round_up(x, m):
    return ((x + m - 1) // m) * m


def _mlp_head_kernel(x_ref, w1_ref, b1_ref, w2_ref, b2_ref, w3_ref, b3_ref,
                     o_ref):
    """Fused MLP head: Linear->ReLU->Linear->ReLU->Linear on one batch tile.

    x arrives f32 straight from HBM and is cast to bf16 in-kernel (free VPU
    work under DMA slack); weights are pre-cast bf16; accumulation, bias adds
    and ReLU are f32.
    """
    x = x_ref[...].astype(jnp.bfloat16)                       # [tb, E]

    h1 = jnp.dot(x, w1_ref[...], preferred_element_type=jnp.float32)
    h1 = jnp.maximum(h1 + b1_ref[...], 0.0)                   # f32 VPU math

    h2 = jnp.dot(h1.astype(jnp.bfloat16), w2_ref[...],
                 preferred_element_type=jnp.float32)
    h2 = jnp.maximum(h2 + b2_ref[...], 0.0)

    out = jnp.dot(h2.astype(jnp.bfloat16), w3_ref[...],
                  preferred_element_type=jnp.float32)
    o_ref[...] = (out + b3_ref[...]).astype(o_ref.dtype)      # lane-dense store


def prepare_head_params(w1, b1, w2, b2, w3, b3):
    """One-time parameter prep (call at init, NOT per forward):
    - cast weight matrices to bf16 (halves the dominant weight-DMA bytes),
    - zero-pad the tiny N=3 output layer to a lane-dense 128-wide slab,
    - keep biases f32 (bias add / ReLU stay on the f32 path)."""
    E = w1.shape[0]
    H, n_out = w3.shape
    assert w1.shape == (E, E) and w2.shape == (E, H)
    w3p = jnp.zeros((H, _LANES), jnp.float32).at[:, :n_out].set(w3)
    b3p = jnp.zeros((1, _LANES), jnp.float32).at[:, :n_out].set(
        b3.reshape(1, n_out))
    return {
        "w1": w1.astype(jnp.bfloat16), "b1": b1.astype(jnp.float32),
        "w2": w2.astype(jnp.bfloat16), "b2": b2.astype(jnp.float32),
        "w3": w3p.astype(jnp.bfloat16), "b3": b3p,
        "n_out": int(n_out),
    }


def glm_head_forward(x, params, *, tile_b=256, split_batch_threshold=512):
    """x: [B, E] float32 embeddings -> [B, 3] float32 logits."""
    B, E = x.shape
    w1, b1 = params["w1"], params["b1"]
    w2, b2 = params["w2"], params["b2"]
    w3, b3 = params["w3"], params["b3"]
    n_out = params["n_out"]
    H = w2.shape[1]
    NP = w3.shape[1]
    assert w1.shape == (E, E) and w3.shape == (H, NP)

    x = x.astype(jnp.float32)

    # Batch tiling: sublane-align to 16; only split into multiple grid tiles
    # (and hence across TensorCores) when the batch is large enough to
    # amortize the ~0.35 us per-step overhead and the duplicated weight DMA.
    B16 = _round_up(max(B, 16), 16)
    if B16 <= split_batch_threshold:
        tb = B16                       # single tile, weights fetched once
    else:
        tb = _round_up(min(tile_b, B16), 16)
    B_pad = _round_up(B, tb)
    if B_pad != B:
        x = jnp.pad(x, ((0, B_pad - B), (0, 0)))
    n_tiles = B_pad // tb

    # VMEM budget (bf16 weights single-buffered; f32 x/out tiles double-buffered).
    weight_vmem = (E * E + E * H + H * NP) * 2 + (E + H + NP) * 4
    tile_vmem = 2 * tb * E * 4 + 2 * tb * NP * 4
    vmem_needed = weight_vmem + tile_vmem
    compiler_kwargs = dict(dimension_semantics=("parallel",))
    # v7x: 64 MiB physical / 32 MiB default scoped VMEM — only raise the limit
    # when the estimate actually needs it; cap below physical with headroom.
    if vmem_needed > 24 * 1024 * 1024:
        compiler_kwargs["vmem_limit_bytes"] = min(
            int(vmem_needed * 3 // 2), 56 * 1024 * 1024)

    # Advisory cost estimate so XLA can overlap the head's weight DMA with
    # whatever produced the embeddings.
    flops = 2 * B_pad * (E * E + E * H + H * NP)
    bytes_accessed = (weight_vmem + B_pad * E * 4 + B_pad * NP * 4)
    cost = pl.CostEstimate(flops=int(flops), transcendentals=0,
                           bytes_accessed=int(bytes_accessed))

    resident = pl.Buffered(1)   # constant index_map -> fetched once, no 2x VMEM

    out = pl.pallas_call(
        _mlp_head_kernel,
        out_shape=jax.ShapeDtypeStruct((B_pad, NP), jnp.float32),
        grid_spec=pltpu.PrefetchScalarGridSpec(
            num_scalar_prefetch=0,
            grid=(n_tiles,),
            in_specs=[
                pl.BlockSpec((tb, E), lambda i: (i, 0)),        # x tile (f32, pipelined)
                pl.BlockSpec((E, E), lambda i: (0, 0), pipeline_mode=resident),
                pl.BlockSpec((1, E), lambda i: (0, 0), pipeline_mode=resident),
                pl.BlockSpec((E, H), lambda i: (0, 0), pipeline_mode=resident),
                pl.BlockSpec((1, H), lambda i: (0, 0), pipeline_mode=resident),
                pl.BlockSpec((H, NP), lambda i: (0, 0), pipeline_mode=resident),
                pl.BlockSpec((1, NP), lambda i: (0, 0), pipeline_mode=resident),
            ],
            out_specs=pl.BlockSpec((tb, NP), lambda i: (i, 0)),
        ),
        compiler_params=pltpu.CompilerParams(**compiler_kwargs),
        cost_estimate=cost,
    )(x, w1, b1, w2, b2, w3, b3)

    return out[:B, :n_out]


def init_params(key, E):
    """Deterministic init matching the nn.Sequential head shapes."""
    H = E // 2
    k1, k2, k3, k4, k5, k6 = jax.random.split(key, 6)
    # store weights [in, out]; PyTorch stores [out, in] — semantics identical.
    w1 = jax.random.normal(k1, (E, E), jnp.float32) * (1.0 / jnp.sqrt(E))
    b1 = jax.random.normal(k2, (1, E), jnp.float32) * 0.01
    w2 = jax.random.normal(k3, (E, H), jnp.float32) * (1.0 / jnp.sqrt(E))
    b2 = jax.random.normal(k4, (1, H), jnp.float32) * 0.01
    w3 = jax.random.normal(k5, (H, 3), jnp.float32) * (1.0 / jnp.sqrt(H))
    b3 = jax.random.normal(k6, (1, 3), jnp.float32) * 0.01
    return w1, b1, w2, b2, w3, b3


def reference_forward(x, w1, b1, w2, b2, w3, b3):
    """Reference with the same precision policy as the kernel:
    bf16 MXU inputs, f32 accumulation / bias / ReLU."""
    xb = x.astype(jnp.bfloat16)
    h1 = jnp.maximum(
        jnp.dot(xb, w1.astype(jnp.bfloat16),
                preferred_element_type=jnp.float32) + b1, 0.0)
    h2 = jnp.maximum(
        jnp.dot(h1.astype(jnp.bfloat16), w2.astype(jnp.bfloat16),
                preferred_element_type=jnp.float32) + b2, 0.0)
    return jnp.dot(h2.astype(jnp.bfloat16), w3.astype(jnp.bfloat16),
                   preferred_element_type=jnp.float32) + b3


if __name__ == "__main__":
    # Small shapes consistent with the module: batch=4, hidden dim E=256.
    B, E = 4, 256
    key = jax.random.PRNGKey(0)
    k_emb, k_params = jax.random.split(key)

    # Synthetic stand-in for the frozen gLM2 backbone output
    # last_hidden_state[:, 0, :]  -> [B, E]
    x = jax.random.normal(k_emb, (B, E), jnp.float32)

    w1, b1, w2, b2, w3, b3 = init_params(k_params, E)

    # One-time prep (bf16 cast + lane padding) — NOT on the per-call path.
    params = prepare_head_params(w1, b1, w2, b2, w3, b3)

    out = glm_head_forward(x, params)
    out = jax.block_until_ready(out)

    ref = reference_forward(x, w1, b1, w2, b2, w3, b3)
    assert out.shape == (B, 3)
    assert jnp.allclose(out, ref, atol=1e-2, rtol=1e-2)

    print("KERNEL_OK")
</pallas_src>

<mosaic_0001>
module attributes {stable_mosaic.version = 11 : i64} {
  func.func @_mlp_head_kernel(%arg0: i32, %arg1: memref<16x256xf32, #tpu.memory_space<vmem>>, %arg2: memref<256x256xbf16, #tpu.memory_space<vmem>>, %arg3: memref<1x256xf32, #tpu.memory_space<vmem>>, %arg4: memref<256x128xbf16, #tpu.memory_space<vmem>>, %arg5: memref<1x128xf32, #tpu.memory_space<vmem>>, %arg6: memref<128x128xbf16, #tpu.memory_space<vmem>>, %arg7: memref<1x128xf32, #tpu.memory_space<vmem>>, %arg8: memref<16x128xf32, #tpu.memory_space<vmem>>) attributes {dimension_semantics = [#tpu.dimension_semantics<parallel>], iteration_bounds = array<i64: 1>, scalar_prefetch = 0 : i64, scratch_operands = 0 : i64, tpu.core_type = #tpu.core_type<tc>, window_params = [{transform_indices = @transform_0, window_bounds = array<i64: 16, 256>}, {pipeline_mode = #tpu.pipeline_mode<synchronous>, transform_indices = @transform_1, window_bounds = array<i64: 256, 256>}, {pipeline_mode = #tpu.pipeline_mode<synchronous>, transform_indices = @transform_2, window_bounds = array<i64: 1, 256>}, {pipeline_mode = #tpu.pipeline_mode<synchronous>, transform_indices = @transform_3, window_bounds = array<i64: 256, 128>}, {pipeline_mode = #tpu.pipeline_mode<synchronous>, transform_indices = @transform_4, window_bounds = array<i64: 1, 128>}, {pipeline_mode = #tpu.pipeline_mode<synchronous>, transform_indices = @transform_5, window_bounds = array<i64: 128, 128>}, {pipeline_mode = #tpu.pipeline_mode<synchronous>, transform_indices = @transform_6, window_bounds = array<i64: 1, 128>}, {transform_indices = @transform_7, window_bounds = array<i64: 16, 128>}]} {
    %c0 = arith.constant 0 : index
    %c0_0 = arith.constant 0 : index
    %0 = vector.load %arg1[%c0, %c0_0] : memref<16x256xf32, #tpu.memory_space<vmem>>, vector<16x256xf32>
    %1 = arith.truncf %0 : vector<16x256xf32> to vector<16x256xbf16>
    %c0_1 = arith.constant 0 : index
    %c0_2 = arith.constant 0 : index
    %2 = vector.load %arg2[%c0_1, %c0_2] : memref<256x256xbf16, #tpu.memory_space<vmem>>, vector<256x256xbf16>
    %cst = arith.constant dense<0.000000e+00> : vector<16x256xf32>
    %3 = tpu.matmul %1, %2, %cst {dimension_numbers = #tpu.dot_dimension_numbers<[1], [0], [0], [1], [0, 0, 1, 1], [], []>} : vector<16x256xbf16>, vector<256x256xbf16>, vector<16x256xf32> -> vector<16x256xf32>
    %c0_3 = arith.constant 0 : index
    %c0_4 = arith.constant 0 : index
    %4 = vector.load %arg3[%c0_3, %c0_4] : memref<1x256xf32, #tpu.memory_space<vmem>>, vector<1x256xf32>
    %5 = vector.broadcast %4 : vector<1x256xf32> to vector<16x256xf32>
    %6 = arith.addf %3, %5 : vector<16x256xf32>
    %cst_5 = arith.constant 0.000000e+00 : f32
    %7 = vector.broadcast %cst_5 : f32 to vector<16x256xf32>
    %8 = arith.maximumf %6, %7 : vector<16x256xf32>
    %9 = arith.truncf %8 : vector<16x256xf32> to vector<16x256xbf16>
    %c0_6 = arith.constant 0 : index
    %c0_7 = arith.constant 0 : index
    %10 = vector.load %arg4[%c0_6, %c0_7] : memref<256x128xbf16, #tpu.memory_space<vmem>>, vector<256x128xbf16>
    %cst_8 = arith.constant dense<0.000000e+00> : vector<16x128xf32>
    %11 = tpu.matmul %9, %10, %cst_8 {dimension_numbers = #tpu.dot_dimension_numbers<[1], [0], [0], [1], [0, 0, 1, 1], [], []>} : vector<16x256xbf16>, vector<256x128xbf16>, vector<16x128xf32> -> vector<16x128xf32>
    %c0_9 = arith.constant 0 : index
    %c0_10 = arith.constant 0 : index
    %12 = vector.load %arg5[%c0_9, %c0_10] : memref<1x128xf32, #tpu.memory_space<vmem>>, vector<1x128xf32>
    %13 = vector.broadcast %12 : vector<1x128xf32> to vector<16x128xf32>
    %14 = arith.addf %11, %13 : vector<16x128xf32>
    %cst_11 = arith.constant 0.000000e+00 : f32
    %15 = vector.broadcast %cst_11 : f32 to vector<16x128xf32>
    %16 = arith.maximumf %14, %15 : vector<16x128xf32>
    %17 = arith.truncf %16 : vector<16x128xf32> to vector<16x128xbf16>
    %c0_12 = arith.constant 0 : index
    %c0_13 = arith.constant 0 : index
    %18 = vector.load %arg6[%c0_12, %c0_13] : memref<128x128xbf16, #tpu.memory_space<vmem>>, vector<128x128xbf16>
    %cst_14 = arith.constant dense<0.000000e+00> : vector<16x128xf32>
    %19 = tpu.matmul %17, %18, %cst_14 {dimension_numbers = #tpu.dot_dimension_numbers<[1], [0], [0], [1], [0, 0, 1, 1], [], []>} : vector<16x128xbf16>, vector<128x128xbf16>, vector<16x128xf32> -> vector<16x128xf32>
    %c0_15 = arith.constant 0 : index
    %c0_16 = arith.constant 0 : index
    %20 = vector.load %arg7[%c0_15, %c0_16] : memref<1x128xf32, #tpu.memory_space<vmem>>, vector<1x128xf32>
    %21 = vector.broadcast %20 : vector<1x128xf32> to vector<16x128xf32>
    %22 = arith.addf %19, %21 : vector<16x128xf32>
    %c0_17 = arith.constant 0 : index
    %c0_18 = arith.constant 0 : index
    %23 = vector.load %arg8[%c0_17, %c0_18] : memref<16x128xf32, #tpu.memory_space<vmem>>, vector<16x128xf32>
    tpu.vector_store %arg8[%c0_17, %c0_18], %22 {strides = array<i32>} : memref<16x128xf32, #tpu.memory_space<vmem>>, vector<16x128xf32>,
    return
  }
  func.func @transform_0(%arg0: i32) -> (i32, i32) {
    %c0_i32 = arith.constant 0 : i32
    %c0_i32_0 = arith.constant 0 : i32
    return %arg0, %c0_i32 : i32, i32
  }
  func.func @transform_1(%arg0: i32) -> (i32, i32) {
    %c0_i32 = arith.constant 0 : i32
    %c0_i32_0 = arith.constant 0 : i32
    %c0_i32_1 = arith.constant 0 : i32
    return %c0_i32, %c0_i32_0 : i32, i32
  }
  func.func @transform_2(%arg0: i32) -> (i32, i32) {
    %c0_i32 = arith.constant 0 : i32
    %c0_i32_0 = arith.constant 0 : i32
    %c0_i32_1 = arith.constant 0 : i32
    return %c0_i32, %c0_i32_0 : i32, i32
  }
  func.func @transform_3(%arg0: i32) -> (i32, i32) {
    %c0_i32 = arith.constant 0 : i32
    %c0_i32_0 = arith.constant 0 : i32
    %c0_i32_1 = arith.constant 0 : i32
    return %c0_i32, %c0_i32_0 : i32, i32
  }
  func.func @transform_4(%arg0: i32) -> (i32, i32) {
    %c0_i32 = arith.constant 0 : i32
    %c0_i32_0 = arith.constant 0 : i32
    %c0_i32_1 = arith.constant 0 : i32
    return %c0_i32, %c0_i32_0 : i32, i32
  }
  func.func @transform_5(%arg0: i32) -> (i32, i32) {
    %c0_i32 = arith.constant 0 : i32
    %c0_i32_0 = arith.constant 0 : i32
    %c0_i32_1 = arith.constant 0 : i32
    return %c0_i32, %c0_i32_0 : i32, i32
  }
  func.func @transform_6(%arg0: i32) -> (i32, i32) {
    %c0_i32 = arith.constant 0 : i32
    %c0_i32_0 = arith.constant 0 : i32
    %c0_i32_1 = arith.constant 0 : i32
    return %c0_i32, %c0_i32_0 : i32, i32
  }
  func.func @transform_7(%arg0: i32) -> (i32, i32) {
    %c0_i32 = arith.constant 0 : i32
    %c0_i32_0 = arith.constant 0 : i32
    return %arg0, %c0_i32 : i32, i32
  }
}

</mosaic_0001>

<llo_original>
// kernel: tpu_custom_call.1
$region0: #{tpu_custom_call.1}
  #allocation0 [shape = 'u32[]', space=smem, size = 0x4, offset = 0x4, fixed_abs, tag = 'smem constant byte address 0x4 - core index']
  #allocation1 [shape = 'u32[144,128]{1,0:T(1,128)}', space=vmem, size = 0x12000, scoped, tag = 'internal scratch']
  %s0 = inlined_call_operand.hbm [shape: f32[16,256], index: 0, kind: input, shape index: {}]
  %s1 = inlined_call_operand.hbm [shape: bf16[256,256], index: 1, kind: input, shape index: {}]
  %s2 = inlined_call_operand.vmem [shape: f32[1,256], index: 2, kind: input, shape index: {}]
  %s3 = inlined_call_operand.hbm [shape: bf16[256,128], index: 3, kind: input, shape index: {}]
  %s4 = inlined_call_operand.vmem [shape: f32[1,128], index: 4, kind: input, shape index: {}]
  %s5 = inlined_call_operand.hbm [shape: bf16[128,128], index: 5, kind: input, shape index: {}]
  %s6 = inlined_call_operand.vmem [shape: f32[1,128], index: 6, kind: input, shape index: {}]
  %s7 = inlined_call_operand.hbm [shape: f32[16,128], index: 7, kind: output, shape index: {}]
  %s8 = sld [smem:[#allocation0]]
  $region54: #{tpu_custom_call.1} parent=0
    _
  %s10 = ssub.s32 1, %s8
  %s11 = scalar_select 0, %s10, %s8
  $region1: #{tpu_custom_call.1} parent=0
    #allocation2 [shape = 'u8[16384]{0}', space=vmem, size = 0x4000, scoped, tag = 'input window, operand 0, single buffered']
    #allocation3 [shape = 's32[1]{0}', space=sflag, size = 0x4, scoped, tag = 'scoped memory for tpu_custom_call.1']
    #allocation4 [shape = 's32[1]{0}', space=sflag, size = 0x4, scoped, tag = 'scoped memory for tpu_custom_call.1']
    #allocation5 [shape = 'u8[131072]{0}', space=vmem, size = 0x20000, scoped, tag = 'input window, operand 1, single buffered']
    #allocation6 [shape = 's32[1]{0}', space=sflag, size = 0x4, scoped, tag = 'scoped memory for tpu_custom_call.1']
    #allocation7 [shape = 'u8[65536]{0}', space=vmem, size = 0x10000, scoped, tag = 'input window, operand 3, single buffered']
    #allocation8 [shape = 'u8[32768]{0}', space=vmem, size = 0x8000, scoped, tag = 'input window, operand 5, single buffered']
    #allocation9 [shape = 's32[1]{0}', space=sflag, size = 0x4, scoped, tag = 'scoped memory for tpu_custom_call.1']
    #allocation10 [shape = 'u8[8192]{0}', space=vmem, size = 0x2000, scoped, tag = 'output window, operand 0, single buffered']
    %12 = vsyncpa [#allocation3], 0
    %13 = vsyncpa [#allocation6], 0
    %14 = vsyncpa [#allocation9], 0
    %15 = vsyncpa [#allocation4], 0
    // Predicated region
    $region2: #{tpu_custom_call.1} parent=1 // pred_check
      _
    $region3: #{tpu_custom_call.1} parent=1 // pred_check_branch
      %17 = sbr.rel (0) target = $region5
    $region4: #{tpu_custom_call.1} parent=1 // pred_region
      %s19 = ssub.s32 512, 512
      %20 = vsyncadd [#allocation3], %s19
      %s21 = sshll.u32 [#allocation2], 4
      %s22 = int_to_ptr.vmem [resolvable:$true] %s21
      %27 = dma.hbm_to_vmem [thread:$0]  %s0, 512, %s22, [#allocation3], 256, 256, 16
    $region5: #{tpu_custom_call.1} parent=1 // pred_fallthru
      _
    // Predicated region
    $region6: #{tpu_custom_call.1} parent=1 // pred_check
      _
    $region7: #{tpu_custom_call.1} parent=1 // pred_check_branch
      %29 = sbr.rel (0) target = $region9
    $region8: #{tpu_custom_call.1} parent=1 // pred_region
      %s31 = ssub.s32 4096, 4096
      %32 = vsyncadd [#allocation6], %s31
      %s33 = sshll.u32 [#allocation5], 4
      %s34 = int_to_ptr.vmem [resolvable:$true] %s33
      %39 = dma.hbm_to_vmem [thread:$0]  %s1, 4096, %s34, [#allocation6], 128, 128, 8
    $region9: #{tpu_custom_call.1} parent=1 // pred_fallthru
      _
    // Predicated region
    $region10: #{tpu_custom_call.1} parent=1 // pred_check
      _
    $region11: #{tpu_custom_call.1} parent=1 // pred_check_branch
      %41 = sbr.rel (0) target = $region13
    $region12: #{tpu_custom_call.1} parent=1 // pred_region
      _
    $region13: #{tpu_custom_call.1} parent=1 // pred_fallthru
      _
    // Predicated region
    $region14: #{tpu_custom_call.1} parent=1 // pred_check
      _
    $region15: #{tpu_custom_call.1} parent=1 // pred_check_branch
      %43 = sbr.rel (0) target = $region17
    $region16: #{tpu_custom_call.1} parent=1 // pred_region
      %s45 = ssub.s32 2048, 2048
      %46 = vsyncadd [#allocation6], %s45
      %s47 = sshll.u32 [#allocation7], 4
      %s48 = int_to_ptr.vmem [resolvable:$true] %s47
      %53 = dma.hbm_to_vmem [thread:$0]  %s3, 2048, %s48, [#allocation6], 64, 64, 4
    $region17: #{tpu_custom_call.1} parent=1 // pred_fallthru
      _
    // Predicated region
    $region18: #{tpu_custom_call.1} parent=1 // pred_check
      _
    $region19: #{tpu_custom_call.1} parent=1 // pred_check_branch
      %55 = sbr.rel (0) target = $region21
    $region20: #{tpu_custom_call.1} parent=1 // pred_region
      _
    $region21: #{tpu_custom_call.1} parent=1 // pred_fallthru
      _
    // Predicated region
    $region22: #{tpu_custom_call.1} parent=1 // pred_check
      _
    $region23: #{tpu_custom_call.1} parent=1 // pred_check_branch
      %57 = sbr.rel (0) target = $region25
    $region24: #{tpu_custom_call.1} parent=1 // pred_region
      %s59 = ssub.s32 1024, 1024
      %60 = vsyncadd [#allocation9], %s59
      %s61 = sshll.u32 [#allocation8], 4
      %s62 = int_to_ptr.vmem [resolvable:$true] %s61
      %67 = dma.hbm_to_vmem [thread:$0]  %s5, 1024, %s62, [#allocation9], 64, 64, 4
    $region25: #{tpu_custom_call.1} parent=1 // pred_fallthru
      _
    // Predicated region
    $region26: #{tpu_custom_call.1} parent=1 // pred_check
      _
    $region27: #{tpu_custom_call.1} parent=1 // pred_check_branch
      %69 = sbr.rel (0) target = $region29
    $region28: #{tpu_custom_call.1} parent=1 // pred_region
      _
    $region29: #{tpu_custom_call.1} parent=1 // pred_fallthru
      _
    // Predicated region
    $region30: #{tpu_custom_call.1} parent=1 // pred_check
      _
    $region31: #{tpu_custom_call.1} parent=1 // pred_check_branch
      %71 = sbr.rel (0) target = $region33
    $region32: #{tpu_custom_call.1} parent=1 // pred_region
      %72 = dma.done [#allocation3], 512
    $region33: #{tpu_custom_call.1} parent=1 // pred_fallthru
      _
    // Predicated region
    $region34: #{tpu_custom_call.1} parent=1 // pred_check
      _
    $region35: #{tpu_custom_call.1} parent=1 // pred_check_branch
      %74 = sbr.rel (0) target = $region37
    $region36: #{tpu_custom_call.1} parent=1 // pred_region
      %75 = dma.done [#allocation6], 4096
    $region37: #{tpu_custom_call.1} parent=1 // pred_fallthru
      _
    // Predicated region
    $region38: #{tpu_custom_call.1} parent=1 // pred_check
      _
    $region39: #{tpu_custom_call.1} parent=1 // pred_check_branch
      %77 = sbr.rel (0) target = $region41
    $region40: #{tpu_custom_call.1} parent=1 // pred_region
      %78 = dma.done [#allocation6], 2048
    $region41: #{tpu_custom_call.1} parent=1 // pred_fallthru
      _
    // Predicated region
    $region42: #{tpu_custom_call.1} parent=1 // pred_check
      _
    $region43: #{tpu_custom_call.1} parent=1 // pred_check_branch
      %80 = sbr.rel (0) target = $region45
    $region44: #{tpu_custom_call.1} parent=1 // pred_region
      %81 = dma.done [#allocation9], 1024
    $region45: #{tpu_custom_call.1} parent=1 // pred_fallthru
      _
    %v83 = vld [vmem:[#allocation2] sm:$0xff]
    %v84 = vld [vmem:[#allocation2 + $0x8] sm:$0xff]
    %v85 = vld [vmem:[#allocation2 + $0x10] sm:$0xff]
    %v86 = vld [vmem:[#allocation2 + $0x18] sm:$0xff]
    %v87 = vpack.c.bf16 %v85, %v83
    %v88 = vpack.c.bf16 %v86, %v84
    %v89 = vld [vmem:[#allocation5] sm:$0xff]
    %v90 = vld [vmem:[#allocation5 + $0x8] sm:$0xff]
    %v91 = vld [vmem:[#allocation5 + $0x10] sm:$0xff]
    %v92 = vld [vmem:[#allocation5 + $0x18] sm:$0xff]
    %v93 = vld [vmem:[#allocation5 + $0x20] sm:$0xff]
    %v94 = vld [vmem:[#allocation5 + $0x28] sm:$0xff]
    %v95 = vld [vmem:[#allocation5 + $0x30] sm:$0xff]
    %v96 = vld [vmem:[#allocation5 + $0x38] sm:$0xff]
    %v97 = vld [vmem:[#allocation5 + $0x40] sm:$0xff]
    %v98 = vld [vmem:[#allocation5 + $0x48] sm:$0xff]
    %v99 = vld [vmem:[#allocation5 + $0x50] sm:$0xff]
    %v100 = vld [vmem:[#allocation5 + $0x58] sm:$0xff]
    %v101 = vld [vmem:[#allocation5 + $0x60] sm:$0xff]
    %v102 = vld [vmem:[#allocation5 + $0x68] sm:$0xff]
    %v103 = vld [vmem:[#allocation5 + $0x70] sm:$0xff]
    %v104 = vld [vmem:[#allocation5 + $0x78] sm:$0xff]
    %v105 = vld [vmem:[#allocation5 + $0x80] sm:$0xff]
    %v106 = vld [vmem:[#allocation5 + $0x88] sm:$0xff]
    %v107 = vld [vmem:[#allocation5 + $0x90] sm:$0xff]
    %v108 = vld [vmem:[#allocation5 + $0x98] sm:$0xff]
    %v109 = vld [vmem:[#allocation5 + $0xa0] sm:$0xff]
    %v110 = vld [vmem:[#allocation5 + $0xa8] sm:$0xff]
    %v111 = vld [vmem:[#allocation5 + $0xb0] sm:$0xff]
    %v112 = vld [vmem:[#allocation5 + $0xb8] sm:$0xff]
    %v113 = vld [vmem:[#allocation5 + $0xc0] sm:$0xff]
    %v114 = vld [vmem:[#allocation5 + $0xc8] sm:$0xff]
    %v115 = vld [vmem:[#allocation5 + $0xd0] sm:$0xff]
    %v116 = vld [vmem:[#allocation5 + $0xd8] sm:$0xff]
    %v117 = vld [vmem:[#allocation5 + $0xe0] sm:$0xff]
    %v118 = vld [vmem:[#allocation5 + $0xe8] sm:$0xff]
    %v119 = vld [vmem:[#allocation5 + $0xf0] sm:$0xff]
    %v120 = vld [vmem:[#allocation5 + $0xf8] sm:$0xff]
    %v121 = vld [vmem:[%s2] sm:$0x3]
    %v123 = vlaneseq
    %v124 = vshrl.u32 %v123, 7
    %v125 = vsub.s32 0, %v124
    %v126 = vrot.slane %v121, %v125
    %v127 = vlaneseq
    %v128 = vshrl.u32 %v127, 7
    %v129 = vsub.s32 1, %v128
    %v130 = vrot.slane %v121, %v129
    %v165 = vunpack.c.l.b16 %v89
    %v166 = vunpack.c.h.b16 %v89
    %v167 = vunpack.c.l.b16 %v90
    %v168 = vunpack.c.h.b16 %v90
    %v169 = vunpack.c.l.b16 %v91
    %v170 = vunpack.c.h.b16 %v91
    %v171 = vunpack.c.l.b16 %v92
    %v172 = vunpack.c.h.b16 %v92
    %v173 = vunpack.c.l.b16 %v93
    %v174 = vunpack.c.h.b16 %v93
    %v175 = vunpack.c.l.b16 %v94
    %v176 = vunpack.c.h.b16 %v94
    %v177 = vunpack.c.l.b16 %v95
    %v178 = vunpack.c.h.b16 %v95
    %v179 = vunpack.c.l.b16 %v96
    %v180 = vunpack.c.h.b16 %v96
    %v181 = vunpack.c.l.b16 %v97
    %v182 = vunpack.c.h.b16 %v97
    %v183 = vunpack.c.l.b16 %v98
    %v184 = vunpack.c.h.b16 %v98
    %v185 = vunpack.c.l.b16 %v99
    %v186 = vunpack.c.h.b16 %v99
    %v187 = vunpack.c.l.b16 %v100
    %v188 = vunpack.c.h.b16 %v100
    %v189 = vunpack.c.l.b16 %v101
    %v190 = vunpack.c.h.b16 %v101
    %v191 = vunpack.c.l.b16 %v102
    %v192 = vunpack.c.h.b16 %v102
    %v193 = vunpack.c.l.b16 %v103
    %v194 = vunpack.c.h.b16 %v103
    %v195 = vunpack.c.l.b16 %v104
    %v196 = vunpack.c.h.b16 %v104
    %v197 = vunpack.c.l.b16 %v105
    %v198 = vunpack.c.h.b16 %v105
    %v199 = vunpack.c.l.b16 %v106
    %v200 = vunpack.c.h.b16 %v106
    %v201 = vunpack.c.l.b16 %v107
    %v202 = vunpack.c.h.b16 %v107
    %v203 = vunpack.c.l.b16 %v108
    %v204 = vunpack.c.h.b16 %v108
    %v205 = vunpack.c.l.b16 %v109
    %v206 = vunpack.c.h.b16 %v109
    %v207 = vunpack.c.l.b16 %v110
    %v208 = vunpack.c.h.b16 %v110
    %v209 = vunpack.c.l.b16 %v111
    %v210 = vunpack.c.h.b16 %v111
    %v211 = vunpack.c.l.b16 %v112
    %v212 = vunpack.c.h.b16 %v112
    %v213 = vunpack.c.l.b16 %v113
    %v214 = vunpack.c.h.b16 %v113
    %v215 = vunpack.c.l.b16 %v114
    %v216 = vunpack.c.h.b16 %v114
    %v217 = vunpack.c.l.b16 %v115
    %v218 = vunpack.c.h.b16 %v115
    %v219 = vunpack.c.l.b16 %v116
    %v220 = vunpack.c.h.b16 %v116
    %v221 = vunpack.c.l.b16 %v117
    %v222 = vunpack.c.h.b16 %v117
    %v223 = vunpack.c.l.b16 %v118
    %v224 = vunpack.c.h.b16 %v118
    %v225 = vunpack.c.l.b16 %v119
    %v226 = vunpack.c.h.b16 %v119
    %v227 = vunpack.c.l.b16 %v120
    %v228 = vunpack.c.h.b16 %v120
    %v229 = vpack.c.b16 %v167, %v165
    %v230 = vpack.c.b16 %v168, %v166
    %v231 = vpack.c.b16 %v171, %v169
    %v232 = vpack.c.b16 %v172, %v170
    %v233 = vpack.c.b16 %v175, %v173
    %v234 = vpack.c.b16 %v176, %v174
    %v235 = vpack.c.b16 %v179, %v177
    %v236 = vpack.c.b16 %v180, %v178
    %v237 = vpack.c.b16 %v183, %v181
    %v238 = vpack.c.b16 %v184, %v182
    %v239 = vpack.c.b16 %v187, %v185
    %v240 = vpack.c.b16 %v188, %v186
    %v241 = vpack.c.b16 %v191, %v189
    %v242 = vpack.c.b16 %v192, %v190
    %v243 = vpack.c.b16 %v195, %v193
    %v244 = vpack.c.b16 %v196, %v194
    %v245 = vpack.c.b16 %v199, %v197
    %v246 = vpack.c.b16 %v200, %v198
    %v247 = vpack.c.b16 %v203, %v201
    %v248 = vpack.c.b16 %v204, %v202
    %v249 = vpack.c.b16 %v207, %v205
    %v250 = vpack.c.b16 %v208, %v206
    %v251 = vpack.c.b16 %v211, %v209
    %v252 = vpack.c.b16 %v212, %v210
    %v253 = vpack.c.b16 %v215, %v213
    %v254 = vpack.c.b16 %v216, %v214
    %v255 = vpack.c.b16 %v219, %v217
    %v256 = vpack.c.b16 %v220, %v218
    %v257 = vpack.c.b16 %v223, %v221
    %v258 = vpack.c.b16 %v224, %v222
    %v259 = vpack.c.b16 %v227, %v225
    %v260 = vpack.c.b16 %v228, %v226
    %293 = vmatprep.subr.bf16.mxu0 %v230
    %294 = vmatpush1.bf16.msra.mxu0 %v229
    %295 = vmatprep.subr.bf16.mxu0 %v232
    %296 = vmatpush1.bf16.msra.mxu0 %v231
    %297 = vmatprep.subr.bf16.mxu0 %v234
    %298 = vmatpush1.bf16.msra.mxu0 %v233
    %299 = vmatprep.subr.bf16.mxu0 %v236
    %300 = vmatpush1.bf16.msra.mxu0 %v235
    %301 = vmatprep.subr.bf16.mxu0 %v238
    %302 = vmatpush1.bf16.msra.mxu0 %v237
    %303 = vmatprep.subr.bf16.mxu0 %v240
    %304 = vmatpush1.bf16.msra.mxu0 %v239
    %305 = vmatprep.subr.bf16.mxu0 %v242
    %306 = vmatpush1.bf16.msra.mxu0 %v241
    %307 = vmatprep.subr.bf16.mxu0 %v244
    %308 = vmatpush1.bf16.msra.mxu0 %v243
    %309 = vmatprep.subr.bf16.mxu0 %v246
    %310 = vmatpush1.bf16.msra.mxu0 %v245
    %311 = vmatprep.subr.bf16.mxu0 %v248
    %312 = vmatpush1.bf16.msra.mxu0 %v247
    %313 = vmatprep.subr.bf16.mxu0 %v250
    %314 = vmatpush1.bf16.msra.mxu0 %v249
    %315 = vmatprep.subr.bf16.mxu0 %v252
    %316 = vmatpush1.bf16.msra.mxu0 %v251
    %317 = vmatprep.subr.bf16.mxu0 %v254
    %318 = vmatpush1.bf16.msra.mxu0 %v253
    %319 = vmatprep.subr.bf16.mxu0 %v256
    %320 = vmatpush1.bf16.msra.mxu0 %v255
    %321 = vmatprep.subr.bf16.mxu0 %v258
    %322 = vmatpush1.bf16.msra.mxu0 %v257
    %323 = vmatprep.subr.bf16.mxu0 %v260
    %324 = vmatpush1.bf16.msra.mxu0 %v259
    %325 = vmatprep.mubr.bf16.mxu0 %v88
    %326 = vmatmul.mubr.bf16.gmra.mrb[0].mxu0 %v87
    %v327 = vpop.f32.mrb[0].mxu0
    %v328 = vadd.f32 %v126, %v327
    %v329 = vpop.f32.mrb[0].mxu0
    %v330 = vadd.f32 %v130, %v329
    %v331 = vpop.f32.mrb[0].mxu0
    %v332 = vadd.f32 %v126, %v331
    %v333 = vpop.f32.mrb[0].mxu0
    %v334 = vadd.f32 %v130, %v333
    %335 = vdwg.mxu0
    %v336 = vmax.f32 %v328, 0.0
    %v337 = vmax.f32 %v330, 0.0
    %v338 = vmax.f32 %v332, 0.0
    %v339 = vmax.f32 %v334, 0.0
    %v340 = vpack.c.bf16 %v338, %v336
    %v341 = vpack.c.bf16 %v339, %v337
    %v342 = vld [vmem:[#allocation7] sm:$0xf]
    %v343 = vld [vmem:[#allocation7 + $0x4] sm:$0xf]
    %v344 = vld [vmem:[#allocation7 + $0x8] sm:$0xf]
    %v345 = vld [vmem:[#allocation7 + $0xc] sm:$0xf]
    %v346 = vld [vmem:[#allocation7 + $0x10] sm:$0xf]
    %v347 = vld [vmem:[#allocation7 + $0x14] sm:$0xf]
    %v348 = vld [vmem:[#allocation7 + $0x18] sm:$0xf]
    %v349 = vld [vmem:[#allocation7 + $0x1c] sm:$0xf]
    %v350 = vld [vmem:[#allocation7 + $0x20] sm:$0xf]
    %v351 = vld [vmem:[#allocation7 + $0x24] sm:$0xf]
    %v352 = vld [vmem:[#allocation7 + $0x28] sm:$0xf]
    %v353 = vld [vmem:[#allocation7 + $0x2c] sm:$0xf]
    %v354 = vld [vmem:[#allocation7 + $0x30] sm:$0xf]
    %v355 = vld [vmem:[#allocation7 + $0x34] sm:$0xf]
    %v356 = vld [vmem:[#allocation7 + $0x38] sm:$0xf]
    %v357 = vld [vmem:[#allocation7 + $0x3c] sm:$0xf]
    %v358 = vld [vmem:[#allocation7 + $0x40] sm:$0xf]
    %v359 = vld [vmem:[#allocation7 + $0x44] sm:$0xf]
    %v360 = vld [vmem:[#allocation7 + $0x48] sm:$0xf]
    %v361 = vld [vmem:[#allocation7 + $0x4c] sm:$0xf]
    %v362 = vld [vmem:[#allocation7 + $0x50] sm:$0xf]
    %v363 = vld [vmem:[#allocation7 + $0x54] sm:$0xf]
    %v364 = vld [vmem:[#allocation7 + $0x58] sm:$0xf]
    %v365 = vld [vmem:[#allocation7 + $0x5c] sm:$0xf]
    %v366 = vld [vmem:[#allocation7 + $0x60] sm:$0xf]
    %v367 = vld [vmem:[#allocation7 + $0x64] sm:$0xf]
    %v368 = vld [vmem:[#allocation7 + $0x68] sm:$0xf]
    %v369 = vld [vmem:[#allocation7 + $0x6c] sm:$0xf]
    %v370 = vld [vmem:[#allocation7 + $0x70] sm:$0xf]
    %v371 = vld [vmem:[#allocation7 + $0x74] sm:$0xf]
    %v372 = vld [vmem:[#allocation7 + $0x78] sm:$0xf]
    %v373 = vld [vmem:[#allocation7 + $0x7c] sm:$0xf]
    %v374 = vld [vmem:[%s4] sm:$0x1]
    %v376 = vlaneseq
    %v377 = vshrl.u32 %v376, 7
    %v378 = vsub.s32 0, %v377
    %v379 = vrot.slane %v374, %v378
    %v413 = vunpack.c.l.b16 %v342
    %v414 = vunpack.c.l.b16 %v343
    %v415 = vunpack.c.l.b16 %v344
    %v416 = vunpack.c.l.b16 %v345
    %v417 = vunpack.c.l.b16 %v346
    %v418 = vunpack.c.l.b16 %v347
    %v419 = vunpack.c.l.b16 %v348
    %v420 = vunpack.c.l.b16 %v349
    %v421 = vunpack.c.l.b16 %v350
    %v422 = vunpack.c.l.b16 %v351
    %v423 = vunpack.c.l.b16 %v352
    %v424 = vunpack.c.l.b16 %v353
    %v425 = vunpack.c.l.b16 %v354
    %v426 = vunpack.c.l.b16 %v355
    %v427 = vunpack.c.l.b16 %v356
    %v428 = vunpack.c.l.b16 %v357
    %v429 = vunpack.c.l.b16 %v358
    %v430 = vunpack.c.l.b16 %v359
    %v431 = vunpack.c.l.b16 %v360
    %v432 = vunpack.c.l.b16 %v361
    %v433 = vunpack.c.l.b16 %v362
    %v434 = vunpack.c.l.b16 %v363
    %v435 = vunpack.c.l.b16 %v364
    %v436 = vunpack.c.l.b16 %v365
    %v437 = vunpack.c.l.b16 %v366
    %v438 = vunpack.c.l.b16 %v367
    %v439 = vunpack.c.l.b16 %v368
    %v440 = vunpack.c.l.b16 %v369
    %v441 = vunpack.c.l.b16 %v370
    %v442 = vunpack.c.l.b16 %v371
    %v443 = vunpack.c.l.b16 %v372
    %v444 = vunpack.c.l.b16 %v373
    %v445 = vpack.c.b16 %v414, %v413
    %v446 = vpack.c.b16 %v416, %v415
    %v447 = vpack.c.b16 %v418, %v417
    %v448 = vpack.c.b16 %v420, %v419
    %v449 = vpack.c.b16 %v422, %v421
    %v450 = vpack.c.b16 %v424, %v423
    %v451 = vpack.c.b16 %v426, %v425
    %v452 = vpack.c.b16 %v428, %v427
    %v453 = vpack.c.b16 %v430, %v429
    %v454 = vpack.c.b16 %v432, %v431
    %v455 = vpack.c.b16 %v434, %v433
    %v456 = vpack.c.b16 %v436, %v435
    %v457 = vpack.c.b16 %v438, %v437
    %v458 = vpack.c.b16 %v440, %v439
    %v459 = vpack.c.b16 %v442, %v441
    %v460 = vpack.c.b16 %v444, %v443
    %477 = vmatprep.subr.bf16.mxu0 0
    %478 = vmatpush1.bf16.msra.mxu0 %v445
    %479 = vmatprep.subr.bf16.mxu0 0
    %480 = vmatpush1.bf16.msra.mxu0 %v446
    %481 = vmatprep.subr.bf16.mxu0 0
    %482 = vmatpush1.bf16.msra.mxu0 %v447
    %483 = vmatprep.subr.bf16.mxu0 0
    %484 = vmatpush1.bf16.msra.mxu0 %v448
    %485 = vmatprep.subr.bf16.mxu0 0
    %486 = vmatpush1.bf16.msra.mxu0 %v449
    %487 = vmatprep.subr.bf16.mxu0 0
    %488 = vmatpush1.bf16.msra.mxu0 %v450
    %489 = vmatprep.subr.bf16.mxu0 0
    %490 = vmatpush1.bf16.msra.mxu0 %v451
    %491 = vmatprep.subr.bf16.mxu0 0
    %492 = vmatpush1.bf16.msra.mxu0 %v452
    %493 = vmatprep.subr.bf16.mxu0 0
    %494 = vmatpush1.bf16.msra.mxu0 %v453
    %495 = vmatprep.subr.bf16.mxu0 0
    %496 = vmatpush1.bf16.msra.mxu0 %v454
    %497 = vmatprep.subr.bf16.mxu0 0
    %498 = vmatpush1.bf16.msra.mxu0 %v455
    %499 = vmatprep.subr.bf16.mxu0 0
    %500 = vmatpush1.bf16.msra.mxu0 %v456
    %501 = vmatprep.subr.bf16.mxu0 0
    %502 = vmatpush1.bf16.msra.mxu0 %v457
    %503 = vmatprep.subr.bf16.mxu0 0
    %504 = vmatpush1.bf16.msra.mxu0 %v458
    %505 = vmatprep.subr.bf16.mxu0 0
    %506 = vmatpush1.bf16.msra.mxu0 %v459
    %507 = vmatprep.subr.bf16.mxu0 0
    %508 = vmatpush1.bf16.msra.mxu0 %v460
    %509 = vmatprep.mubr.bf16.mxu0 %v341
    %510 = vmatmul.mubr.bf16.gmra.mrb[0].mxu0 %v340
    %v511 = vpop.f32.mrb[0].mxu0
    %v512 = vadd.f32 %v379, %v511
    %v513 = vpop.f32.mrb[0].mxu0
    %v514 = vpop.f32.mrb[0].mxu0
    %v515 = vadd.f32 %v379, %v514
    %v516 = vpop.f32.mrb[0].mxu0
    %517 = vdwg.mxu0
    %v518 = vmax.f32 %v512, 0.0
    %v519 = vmax.f32 %v515, 0.0
    %v520 = vpack.c.bf16 %v519, %v518
    %v521 = vld [vmem:[#allocation8] sm:$0xf]
    %v522 = vld [vmem:[#allocation8 + $0x4] sm:$0xf]
    %v523 = vld [vmem:[#allocation8 + $0x8] sm:$0xf]
    %v524 = vld [vmem:[#allocation8 + $0xc] sm:$0xf]
    %v525 = vld [vmem:[#allocation8 + $0x10] sm:$0xf]
    %v526 = vld [vmem:[#allocation8 + $0x14] sm:$0xf]
    %v527 = vld [vmem:[#allocation8 + $0x18] sm:$0xf]
    %v528 = vld [vmem:[#allocation8 + $0x1c] sm:$0xf]
    %v529 = vld [vmem:[#allocation8 + $0x20] sm:$0xf]
    %v530 = vld [vmem:[#allocation8 + $0x24] sm:$0xf]
    %v531 = vld [vmem:[#allocation8 + $0x28] sm:$0xf]
    %v532 = vld [vmem:[#allocation8 + $0x2c] sm:$0xf]
    %v533 = vld [vmem:[#allocation8 + $0x30] sm:$0xf]
    %v534 = vld [vmem:[#allocation8 + $0x34] sm:$0xf]
    %v535 = vld [vmem:[#allocation8 + $0x38] sm:$0xf]
    %v536 = vld [vmem:[#allocation8 + $0x3c] sm:$0xf]
    %v537 = vld [vmem:[%s6] sm:$0x1]
    %v539 = vlaneseq
    %v540 = vshrl.u32 %v539, 7
    %v541 = vsub.s32 0, %v540
    %v542 = vrot.slane %v537, %v541
    %v560 = vunpack.c.l.b16 %v521
    %v561 = vunpack.c.l.b16 %v522
    %v562 = vunpack.c.l.b16 %v523
    %v563 = vunpack.c.l.b16 %v524
    %v564 = vunpack.c.l.b16 %v525
    %v565 = vunpack.c.l.b16 %v526
    %v566 = vunpack.c.l.b16 %v527
    %v567 = vunpack.c.l.b16 %v528
    %v568 = vunpack.c.l.b16 %v529
    %v569 = vunpack.c.l.b16 %v530
    %v570 = vunpack.c.l.b16 %v531
    %v571 = vunpack.c.l.b16 %v532
    %v572 = vunpack.c.l.b16 %v533
    %v573 = vunpack.c.l.b16 %v534
    %v574 = vunpack.c.l.b16 %v535
    %v575 = vunpack.c.l.b16 %v536
    %v576 = vpack.c.b16 %v561, %v560
    %v577 = vpack.c.b16 %v563, %v562
    %v578 = vpack.c.b16 %v565, %v564
    %v579 = vpack.c.b16 %v567, %v566
    %v580 = vpack.c.b16 %v569, %v568
    %v581 = vpack.c.b16 %v571, %v570
    %v582 = vpack.c.b16 %v573, %v572
    %v583 = vpack.c.b16 %v575, %v574
    %592 = vmatprep.subr.bf16.mxu0 0
    %593 = vmatpush1.bf16.msra.mxu0 %v576
    %594 = vmatprep.subr.bf16.mxu0 0
    %595 = vmatpush1.bf16.msra.mxu0 %v577
    %596 = vmatprep.subr.bf16.mxu0 0
    %597 = vmatpush1.bf16.msra.mxu0 %v578
    %598 = vmatprep.subr.bf16.mxu0 0
    %599 = vmatpush1.bf16.msra.mxu0 %v579
    %600 = vmatprep.subr.bf16.mxu0 0
    %601 = vmatpush1.bf16.msra.mxu0 %v580
    %602 = vmatprep.subr.bf16.mxu0 0
    %603 = vmatpush1.bf16.msra.mxu0 %v581
    %604 = vmatprep.subr.bf16.mxu0 0
    %605 = vmatpush1.bf16.msra.mxu0 %v582
    %606 = vmatprep.subr.bf16.mxu0 0
    %607 = vmatpush1.bf16.msra.mxu0 %v583
    %608 = vmatprep.subr.bf16.mxu0 0
    %609 = vmatpush1.bf16.msra.mxu0 0
    %610 = vmatprep.subr.bf16.mxu0 0
    %611 = vmatpush1.bf16.msra.mxu0 0
    %612 = vmatprep.subr.bf16.mxu0 0
    %613 = vmatpush1.bf16.msra.mxu0 0
    %614 = vmatprep.subr.bf16.mxu0 0
    %615 = vmatpush1.bf16.msra.mxu0 0
    %616 = vmatprep.subr.bf16.mxu0 0
    %617 = vmatpush1.bf16.msra.mxu0 0
    %618 = vmatprep.subr.bf16.mxu0 0
    %619 = vmatpush1.bf16.msra.mxu0 0
    %620 = vmatprep.subr.bf16.mxu0 0
    %621 = vmatpush1.bf16.msra.mxu0 0
    %622 = vmatprep.subr.bf16.mxu0 0
    %623 = vmatpush1.bf16.msra.mxu0 0
    %624 = vmatprep.mubr.bf16.mxu0 0
    %625 = vmatmul.mubr.bf16.gmra.mrb[0].mxu0 %v520
    %v626 = vpop.f32.mrb[0].mxu0
    %v627 = vadd.f32 %v542, %v626
    %v628 = vpop.f32.mrb[0].mxu0
    %v629 = vpop.f32.mrb[0].mxu0
    %v630 = vadd.f32 %v542, %v629
    %v631 = vpop.f32.mrb[0].mxu0
    %632 = vdwg.mxu0
    %633 = vst [vmem:[#allocation10] sm:$0xff] %v627
    %634 = vst [vmem:[#allocation10 + $0x8] sm:$0xff] %v630
    // Predicated region
    $region46: #{tpu_custom_call.1} parent=1 // pred_check
      _
    $region47: #{tpu_custom_call.1} parent=1 // pred_check_branch
      %636 = sbr.rel (0) target = $region49
    $region48: #{tpu_custom_call.1} parent=1 // pred_region
      %s638 = ssub.s32 256, 256
      %639 = vsyncadd [#allocation4], %s638
      %s640 = sshll.u32 [#allocation10], 4
      %s641 = int_to_ptr.vmem [resolvable:$true] %s640
      %646 = dma.vmem_to_hbm [thread:$0]  %s641, 256, %s7, [#allocation4], 128, 128, 8
    $region49: #{tpu_custom_call.1} parent=1 // pred_fallthru
      _
    // Predicated region
    $region50: #{tpu_custom_call.1} parent=1 // pred_check
      _
    $region51: #{tpu_custom_call.1} parent=1 // pred_check_branch
      %648 = sbr.rel (0) target = $region53
    $region52: #{tpu_custom_call.1} parent=1 // pred_region
      %649 = dma.done [#allocation4], 256
    $region53: #{tpu_custom_call.1} parent=1 // pred_fallthru
      _
    %650 = vsyncpa [#allocation3], 1
    %651 = vsyncpa [#allocation6], 1
    %652 = vsyncpa [#allocation9], 1
    %653 = vsyncpa [#allocation4], 1

</llo_original>
